<compile_context>
chip_gen: v7x
topology: tpu7x:2x2x1
jax: 0.10.0
libtpu: 0.0.40
codegen_flags: <defaults>
</compile_context>

<pallas_src>
import functools

import jax
import jax.numpy as jnp
import numpy as np
from jax.experimental import pallas as pl
from jax.experimental.pallas import tpu as pltpu


def _round_up(a, m):
    return (a + m - 1) // m * m


def _cdiv(a, b):
    return (a + b - 1) // b


def _device_caps():
    """Per-TPU-generation (batch-tile cap, TensorCores/chip, VMEM cap in bytes)."""
    try:
        kind = jax.devices()[0].device_kind.lower()
    except Exception:
        kind = ""
    if "v7" in kind:                                   # 64 MiB VMEM/TC, 2 TCs
        return 1024, 2, 40 << 20
    if "v6" in kind:                                   # 128 MiB VMEM, 1 TC
        return 1024, 1, 96 << 20
    if "v5 lite" in kind or "v5e" in kind or "v5litepod" in kind:
        return 512, 1, 64 << 20                        # raise above 16 MiB default
    return 512, 1, 48 << 20                            # conservative fallback


# ----------------------------------------------------------------------------
# Pallas kernel: TB batch elements per grid step.
#   x_ref  : (TB*N_pad, n_state)  bf16 flattened points of TB batch elements
#   out_ref: (1, TB)              one CBF value per batch element (lane-dense)
# ----------------------------------------------------------------------------
def cbf_kernel(x_ref, w0_ref, b0_ref, w1_ref, b1_ref, w2_ref, b2_ref,
               wf_ref, bf_ref, out_ref, *, tb, n_pts):
    x = x_ref[...]                                        # (TB*N, ns) bf16

    # conv0 (1x1) == matmul over the feature dim, f32 accumulate, then ReLU
    h = jnp.dot(x, w0_ref[...], preferred_element_type=jnp.float32)
    h = jnp.maximum(h + b0_ref[...], 0.0)                 # (TB*N, 64) f32

    # conv1
    h = jnp.dot(h.astype(jnp.bfloat16), w1_ref[...],
                preferred_element_type=jnp.float32)
    h = jnp.maximum(h + b1_ref[...], 0.0)                 # (TB*N, 128) f32

    # conv2
    h = jnp.dot(h.astype(jnp.bfloat16), w2_ref[...],
                preferred_element_type=jnp.float32)
    h = jnp.maximum(h + b2_ref[...], 0.0)                 # (TB*N, 128) f32

    # max over the point axis (== torch.max(x, dim=2)); n_pts is a multiple
    # of 8 (wrapper pads with duplicated real points), so this reshape only
    # regroups whole sublane tiles and is a pure view.
    m = jnp.max(h.reshape(tb, n_pts, 128), axis=1)        # (TB, 128) f32

    # fc0: Linear(128, 1) for all TB elements at once as a lane-dense
    # (1, TB) row:  (1,128) . (TB,128)^T
    r = jax.lax.dot_general(wf_ref[...], m.astype(jnp.bfloat16),
                            (((1,), (1,)), ((), ())),
                            preferred_element_type=jnp.float32)   # (1, TB)
    out_ref[...] = r + bf_ref[...]                        # broadcast (1,1) bias


# ----------------------------------------------------------------------------
# Wrapper: JAX glue (slice / diff / concat / pad / tile selection) + pallas_call
# ----------------------------------------------------------------------------
@functools.partial(jax.jit, static_argnames=("n_state",))
def cbf_forward(state, other_uav_obs, obstacles, params, n_state):
    # state:          (B, >=n_state)
    # other_uav_obs:  (B, N_uav, >=n_state)
    # obstacles:      (B, N_obs, >=n_state)
    B = state.shape[0]

    s = state[:, :n_state]
    uav = other_uav_obs[..., :n_state]
    obs = obstacles[..., :n_state]

    diff_uav = s[:, None, :] - uav                          # (B, N_uav, ns)
    diff_obs = s[:, None, :] - obs                          # (B, N_obs, ns)
    x = jnp.concatenate([diff_uav, diff_obs], axis=1)       # (B, N, ns)
    N = x.shape[1]
    # Operands hit the MXU as bf16 anyway; casting here halves x's HBM traffic.
    x = x.astype(jnp.bfloat16)

    # ---- batch / point tiling ----------------------------------------------
    tb_cap, n_cores, vmem_cap = _device_caps()
    B8 = _round_up(B, 8)
    N_pad = _round_up(N, 8)

    # Fewest tiles under the per-generation cap; split across TensorCores
    # (balanced, multiple of core count) only on multi-TC chips.
    num_tiles = _cdiv(B8, tb_cap)
    if n_cores > 1 and B8 >= 8 * n_cores:
        num_tiles = _round_up(max(num_tiles, n_cores), n_cores)
    TB = _round_up(_cdiv(B8, num_tiles), 8)
    if TB > 128:
        tb128 = _round_up(TB, 128)
        if num_tiles * tb128 - B8 <= max(B8 // 16, 8):     # <=~6% extra padding
            TB = tb128                                     # unmasked output vst
    B_pad = num_tiles * TB

    if (B_pad, N_pad) != (B, N):
        # Edge padding duplicates the last real batch element (outputs sliced
        # off below) and a real point (keeps the per-batch max exact; zero
        # padding would NOT be safe since relu(0@W0 + b0) can be positive).
        x = jnp.pad(x, ((0, B_pad - B), (0, N_pad - N), (0, 0)), mode="edge")
    x_flat = x.reshape(B_pad * N_pad, n_state)              # (B_pad*N_pad, ns)

    # bf16 matmul weights (f32 accumulation in-kernel); biases stay f32.
    w0t = params["w0t"].astype(jnp.bfloat16)    # (ns, 64)
    w1t = params["w1t"].astype(jnp.bfloat16)    # (64, 128)
    w2t = params["w2t"].astype(jnp.bfloat16)    # (128, 128)
    wf = params["wf"].astype(jnp.bfloat16)      # (1, 128)
    b0, b1, b2, bf = params["b0"], params["b1"], params["b2"], params["bf"]

    # ---- VMEM budget (x block is lane-padded ns->128 in VMEM) ---------------
    rows = TB * N_pad
    x_block_bytes = rows * 128 * 2              # bf16, lane-padded to 128
    act_bytes = rows * 128 * 4                  # one f32 (rows,128) slab
    vmem_needed = 2 * x_block_bytes + 6 * act_bytes + (2 << 20)
    vmem_limit = int(min(vmem_cap, max(vmem_needed + (8 << 20), 32 << 20)))

    # advisory cost estimate for XLA scheduling around the custom call
    flops = 2 * B_pad * N_pad * (n_state * 64 + 64 * 128 + 128 * 128) + 2 * B_pad * 128
    weight_bytes = 2 * (n_state * 64 + 64 * 128 + 128 * 128 + 128) \
        + 4 * (64 + 128 + 128 + 1)
    bytes_accessed = 2 * B_pad * N_pad * n_state + weight_bytes + 4 * B_pad
    ce = pl.CostEstimate(flops=flops, transcendentals=0,
                         bytes_accessed=bytes_accessed)

    kernel = functools.partial(cbf_kernel, tb=TB, n_pts=N_pad)

    out = pl.pallas_call(
        kernel,
        out_shape=jax.ShapeDtypeStruct((num_tiles, TB), jnp.float32),
        grid_spec=pltpu.PrefetchScalarGridSpec(
            num_scalar_prefetch=0,
            grid=(num_tiles,),
            in_specs=[
                pl.BlockSpec((TB * N_pad, n_state), lambda i: (i, 0)),
                pl.BlockSpec(w0t.shape, lambda i: (0, 0)),
                pl.BlockSpec(b0.shape, lambda i: (0, 0)),
                pl.BlockSpec(w1t.shape, lambda i: (0, 0)),
                pl.BlockSpec(b1.shape, lambda i: (0, 0)),
                pl.BlockSpec(w2t.shape, lambda i: (0, 0)),
                pl.BlockSpec(b2.shape, lambda i: (0, 0)),
                pl.BlockSpec(wf.shape, lambda i: (0, 0)),
                pl.BlockSpec(bf.shape, lambda i: (0, 0)),
            ],
            out_specs=pl.BlockSpec((1, TB), lambda i: (i, 0)),
        ),
        compiler_params=pltpu.CompilerParams(
            dimension_semantics=("parallel",),
            vmem_limit_bytes=vmem_limit),
        cost_estimate=ce,
    )(x_flat, w0t, b0, w1t, b1, w2t, b2, wf, bf)

    # (num_tiles, TB) -> (B_pad,) -> drop padding; matches torch.squeeze(dim=1)
    return out.reshape(B_pad)[:B]


# ----------------------------------------------------------------------------
# Deterministic parameter initialization (PyTorch-style uniform bounds)
# ----------------------------------------------------------------------------
def init_params(key, n_state):
    def uniform(k, shape, fan_in):
        bound = 1.0 / np.sqrt(fan_in)
        return jax.random.uniform(k, shape, jnp.float32, -bound, bound)

    ks = jax.random.split(key, 8)
    # Conv1d weights are (out, in, 1) in torch; kernel=1 so store transposed
    # (in, out) matrices directly. Biases stored as (1, out) rows.
    w0t = uniform(ks[0], (n_state, 64), n_state)
    b0 = uniform(ks[1], (1, 64), n_state)
    w1t = uniform(ks[2], (64, 128), 64)
    b1 = uniform(ks[3], (1, 128), 64)
    w2t = uniform(ks[4], (128, 128), 128)
    b2 = uniform(ks[5], (1, 128), 128)
    wf = uniform(ks[6], (1, 128), 128)     # torch Linear(128,1).weight layout
    bf = uniform(ks[7], (1, 1), 128)
    return dict(w0t=w0t, b0=b0, w1t=w1t, b1=b1, w2t=w2t, b2=b2, wf=wf, bf=bf)


# ----------------------------------------------------------------------------
# Pure-JAX references (f32 = module numerics; match_bf16 = kernel numerics)
# ----------------------------------------------------------------------------
def cbf_reference(state, other_uav_obs, obstacles, params, n_state,
                  match_bf16=False):
    cast = (lambda a: a.astype(jnp.bfloat16)) if match_bf16 else (lambda a: a)
    s = state[:, :n_state]
    uav = other_uav_obs[..., :n_state]
    obs = obstacles[..., :n_state]
    x = jnp.concatenate([s[:, None, :] - uav, s[:, None, :] - obs],
                        axis=1).astype(jnp.float32)

    def dense(a, w, b):
        return jnp.dot(cast(a), cast(w), preferred_element_type=jnp.float32) + b

    h = jax.nn.relu(dense(x, params["w0t"], params["b0"]))
    h = jax.nn.relu(dense(h, params["w1t"], params["b1"]))
    h = jax.nn.relu(dense(h, params["w2t"], params["b2"]))
    m = jnp.max(h, axis=1)                       # (B, 128)
    out = jnp.dot(cast(m), cast(params["wf"].T),
                  preferred_element_type=jnp.float32) + params["bf"]
    return out[:, 0]


if __name__ == "__main__":
    key = jax.random.PRNGKey(0)
    n_state = 8
    params = init_params(jax.random.fold_in(key, 0), n_state)

    # small single-tile / point-padding path / multi-tile + batch-padding path
    cases = [(2, 4, 4), (40, 3, 2), (1040, 4, 4)]
    for idx, (B, N_uav, N_obs) in enumerate(cases):
        k_s, k_u, k_o = jax.random.split(jax.random.fold_in(key, idx + 1), 3)
        state = jax.random.normal(k_s, (B, n_state), jnp.float32)
        other_uav_obs = jax.random.normal(k_u, (B, N_uav, n_state), jnp.float32)
        obstacles = jax.random.normal(k_o, (B, N_obs, n_state), jnp.float32)

        h = cbf_forward(state, other_uav_obs, obstacles, params, n_state)
        h = jax.block_until_ready(h)
        assert h.shape == (B,)

        # Tight check against a reference using the same bf16 matmul inputs
        # (validates all kernel plumbing: tiling, padding, max, fc0).
        h_bf16 = cbf_reference(state, other_uav_obs, obstacles, params,
                               n_state, match_bf16=True)
        np.testing.assert_allclose(np.asarray(h), np.asarray(h_bf16),
                                   rtol=1e-3, atol=1e-3)

        # Loose check against the f32 module numerics (bf16 MXU operands).
        h_f32 = cbf_reference(state, other_uav_obs, obstacles, params,
                              n_state, match_bf16=False)
        np.testing.assert_allclose(np.asarray(h), np.asarray(h_f32),
                                   rtol=5e-2, atol=5e-2)

    print("KERNEL_OK")
</pallas_src>

<mosaic_0001>
module attributes {stable_mosaic.version = 11 : i64} {
  func.func @cbf_kernel(%arg0: i32, %arg1: memref<64x8xbf16, #tpu.memory_space<vmem>>, %arg2: memref<8x64xbf16, #tpu.memory_space<vmem>>, %arg3: memref<1x64xf32, #tpu.memory_space<vmem>>, %arg4: memref<64x128xbf16, #tpu.memory_space<vmem>>, %arg5: memref<1x128xf32, #tpu.memory_space<vmem>>, %arg6: memref<128x128xbf16, #tpu.memory_space<vmem>>, %arg7: memref<1x128xf32, #tpu.memory_space<vmem>>, %arg8: memref<1x128xbf16, #tpu.memory_space<vmem>>, %arg9: memref<1x1xf32, #tpu.memory_space<vmem>>, %arg10: memref<1x8xf32, #tpu.memory_space<vmem>>) attributes {dimension_semantics = [#tpu.dimension_semantics<parallel>], iteration_bounds = array<i64: 1>, scalar_prefetch = 0 : i64, scratch_operands = 0 : i64, tpu.core_type = #tpu.core_type<tc>, window_params = [{transform_indices = @transform_0, window_bounds = array<i64: 64, 8>}, {pipeline_mode = #tpu.pipeline_mode<synchronous>, transform_indices = @transform_1, window_bounds = array<i64: 8, 64>}, {pipeline_mode = #tpu.pipeline_mode<synchronous>, transform_indices = @transform_2, window_bounds = array<i64: 1, 64>}, {pipeline_mode = #tpu.pipeline_mode<synchronous>, transform_indices = @transform_3, window_bounds = array<i64: 64, 128>}, {pipeline_mode = #tpu.pipeline_mode<synchronous>, transform_indices = @transform_4, window_bounds = array<i64: 1, 128>}, {pipeline_mode = #tpu.pipeline_mode<synchronous>, transform_indices = @transform_5, window_bounds = array<i64: 128, 128>}, {pipeline_mode = #tpu.pipeline_mode<synchronous>, transform_indices = @transform_6, window_bounds = array<i64: 1, 128>}, {pipeline_mode = #tpu.pipeline_mode<synchronous>, transform_indices = @transform_7, window_bounds = array<i64: 1, 128>}, {pipeline_mode = #tpu.pipeline_mode<synchronous>, transform_indices = @transform_8, window_bounds = array<i64: 1, 1>}, {transform_indices = @transform_9, window_bounds = array<i64: 1, 8>}]} {
    %c0 = arith.constant 0 : index
    %c0_0 = arith.constant 0 : index
    %0 = vector.load %arg1[%c0, %c0_0] : memref<64x8xbf16, #tpu.memory_space<vmem>>, vector<64x8xbf16>
    %c0_1 = arith.constant 0 : index
    %c0_2 = arith.constant 0 : index
    %1 = vector.load %arg2[%c0_1, %c0_2] : memref<8x64xbf16, #tpu.memory_space<vmem>>, vector<8x64xbf16>
    %cst = arith.constant dense<0.000000e+00> : vector<64x64xf32>
    %2 = tpu.matmul %0, %1, %cst {dimension_numbers = #tpu.dot_dimension_numbers<[1], [0], [0], [1], [0, 0, 1, 1], [], []>} : vector<64x8xbf16>, vector<8x64xbf16>, vector<64x64xf32> -> vector<64x64xf32>
    %c0_3 = arith.constant 0 : index
    %c0_4 = arith.constant 0 : index
    %3 = vector.load %arg3[%c0_3, %c0_4] : memref<1x64xf32, #tpu.memory_space<vmem>>, vector<1x64xf32>
    %4 = vector.broadcast %3 : vector<1x64xf32> to vector<64x64xf32>
    %5 = arith.addf %2, %4 : vector<64x64xf32>
    %cst_5 = arith.constant 0.000000e+00 : f32
    %6 = vector.broadcast %cst_5 : f32 to vector<64x64xf32>
    %7 = arith.maximumf %5, %6 : vector<64x64xf32>
    %8 = arith.truncf %7 : vector<64x64xf32> to vector<64x64xbf16>
    %c0_6 = arith.constant 0 : index
    %c0_7 = arith.constant 0 : index
    %9 = vector.load %arg4[%c0_6, %c0_7] : memref<64x128xbf16, #tpu.memory_space<vmem>>, vector<64x128xbf16>
    %cst_8 = arith.constant dense<0.000000e+00> : vector<64x128xf32>
    %10 = tpu.matmul %8, %9, %cst_8 {dimension_numbers = #tpu.dot_dimension_numbers<[1], [0], [0], [1], [0, 0, 1, 1], [], []>} : vector<64x64xbf16>, vector<64x128xbf16>, vector<64x128xf32> -> vector<64x128xf32>
    %c0_9 = arith.constant 0 : index
    %c0_10 = arith.constant 0 : index
    %11 = vector.load %arg5[%c0_9, %c0_10] : memref<1x128xf32, #tpu.memory_space<vmem>>, vector<1x128xf32>
    %12 = vector.broadcast %11 : vector<1x128xf32> to vector<64x128xf32>
    %13 = arith.addf %10, %12 : vector<64x128xf32>
    %cst_11 = arith.constant 0.000000e+00 : f32
    %14 = vector.broadcast %cst_11 : f32 to vector<64x128xf32>
    %15 = arith.maximumf %13, %14 : vector<64x128xf32>
    %16 = arith.truncf %15 : vector<64x128xf32> to vector<64x128xbf16>
    %c0_12 = arith.constant 0 : index
    %c0_13 = arith.constant 0 : index
    %17 = vector.load %arg6[%c0_12, %c0_13] : memref<128x128xbf16, #tpu.memory_space<vmem>>, vector<128x128xbf16>
    %cst_14 = arith.constant dense<0.000000e+00> : vector<64x128xf32>
    %18 = tpu.matmul %16, %17, %cst_14 {dimension_numbers = #tpu.dot_dimension_numbers<[1], [0], [0], [1], [0, 0, 1, 1], [], []>} : vector<64x128xbf16>, vector<128x128xbf16>, vector<64x128xf32> -> vector<64x128xf32>
    %c0_15 = arith.constant 0 : index
    %c0_16 = arith.constant 0 : index
    %19 = vector.load %arg7[%c0_15, %c0_16] : memref<1x128xf32, #tpu.memory_space<vmem>>, vector<1x128xf32>
    %20 = vector.broadcast %19 : vector<1x128xf32> to vector<64x128xf32>
    %21 = arith.addf %18, %20 : vector<64x128xf32>
    %cst_17 = arith.constant 0.000000e+00 : f32
    %22 = vector.broadcast %cst_17 : f32 to vector<64x128xf32>
    %23 = arith.maximumf %21, %22 : vector<64x128xf32>
    %24 = vector.shape_cast %23 : vector<64x128xf32> to vector<8x8x128xf32>
    %cst_18 = arith.constant dense<0xFF800000> : vector<8x128xf32>
    %25 = vector.multi_reduction <maximumf>, %24, %cst_18 [1] : vector<8x8x128xf32> to vector<8x128xf32>
    %c0_19 = arith.constant 0 : index
    %c0_20 = arith.constant 0 : index
    %26 = vector.load %arg8[%c0_19, %c0_20] : memref<1x128xbf16, #tpu.memory_space<vmem>>, vector<1x128xbf16>
    %27 = arith.truncf %25 : vector<8x128xf32> to vector<8x128xbf16>
    %cst_21 = arith.constant dense<0.000000e+00> : vector<1x8xf32>
    %28 = tpu.matmul %26, %27, %cst_21 {dimension_numbers = #tpu.dot_dimension_numbers<[1], [1], [0], [0], [0, 0, 1, 0], [], []>} : vector<1x128xbf16>, vector<8x128xbf16>, vector<1x8xf32> -> vector<1x8xf32>
    %c0_22 = arith.constant 0 : index
    %c0_23 = arith.constant 0 : index
    %29 = vector.load %arg9[%c0_22, %c0_23] : memref<1x1xf32, #tpu.memory_space<vmem>>, vector<1x1xf32>
    %30 = vector.broadcast %29 : vector<1x1xf32> to vector<1x8xf32>
    %31 = arith.addf %28, %30 : vector<1x8xf32>
    %c0_24 = arith.constant 0 : index
    %c0_25 = arith.constant 0 : index
    %32 = vector.load %arg10[%c0_24, %c0_25] : memref<1x8xf32, #tpu.memory_space<vmem>>, vector<1x8xf32>
    tpu.vector_store %arg10[%c0_24, %c0_25], %31 {strides = array<i32>} : memref<1x8xf32, #tpu.memory_space<vmem>>, vector<1x8xf32>,
    return
  }
  func.func @transform_0(%arg0: i32) -> (i32, i32) {
    %c0_i32 = arith.constant 0 : i32
    %c0_i32_0 = arith.constant 0 : i32
    return %arg0, %c0_i32 : i32, i32
  }
  func.func @transform_1(%arg0: i32) -> (i32, i32) {
    %c0_i32 = arith.constant 0 : i32
    %c0_i32_0 = arith.constant 0 : i32
    %c0_i32_1 = arith.constant 0 : i32
    return %c0_i32, %c0_i32_0 : i32, i32
  }
  func.func @transform_2(%arg0: i32) -> (i32, i32) {
    %c0_i32 = arith.constant 0 : i32
    %c0_i32_0 = arith.constant 0 : i32
    %c0_i32_1 = arith.constant 0 : i32
    return %c0_i32, %c0_i32_0 : i32, i32
  }
  func.func @transform_3(%arg0: i32) -> (i32, i32) {
    %c0_i32 = arith.constant 0 : i32
    %c0_i32_0 = arith.constant 0 : i32
    %c0_i32_1 = arith.constant 0 : i32
    return %c0_i32, %c0_i32_0 : i32, i32
  }
  func.func @transform_4(%arg0: i32) -> (i32, i32) {
    %c0_i32 = arith.constant 0 : i32
    %c0_i32_0 = arith.constant 0 : i32
    %c0_i32_1 = arith.constant 0 : i32
    return %c0_i32, %c0_i32_0 : i32, i32
  }
  func.func @transform_5(%arg0: i32) -> (i32, i32) {
    %c0_i32 = arith.constant 0 : i32
    %c0_i32_0 = arith.constant 0 : i32
    %c0_i32_1 = arith.constant 0 : i32
    return %c0_i32, %c0_i32_0 : i32, i32
  }
  func.func @transform_6(%arg0: i32) -> (i32, i32) {
    %c0_i32 = arith.constant 0 : i32
    %c0_i32_0 = arith.constant 0 : i32
    %c0_i32_1 = arith.constant 0 : i32
    return %c0_i32, %c0_i32_0 : i32, i32
  }
  func.func @transform_7(%arg0: i32) -> (i32, i32) {
    %c0_i32 = arith.constant 0 : i32
    %c0_i32_0 = arith.constant 0 : i32
    %c0_i32_1 = arith.constant 0 : i32
    return %c0_i32, %c0_i32_0 : i32, i32
  }
  func.func @transform_8(%arg0: i32) -> (i32, i32) {
    %c0_i32 = arith.constant 0 : i32
    %c0_i32_0 = arith.constant 0 : i32
    %c0_i32_1 = arith.constant 0 : i32
    return %c0_i32, %c0_i32_0 : i32, i32
  }
  func.func @transform_9(%arg0: i32) -> (i32, i32) {
    %c0_i32 = arith.constant 0 : i32
    %c0_i32_0 = arith.constant 0 : i32
    return %arg0, %c0_i32 : i32, i32
  }
}

</mosaic_0001>

<llo_original>
// kernel: cbf_forward.1
$region0: #{cbf_forward.1}
  #allocation0 [shape = 'u32[]', space=smem, size = 0x4, offset = 0x4, fixed_abs, tag = 'smem constant byte address 0x4 - core index']
  #allocation1 [shape = 'u32[144,128]{1,0:T(1,128)}', space=vmem, size = 0x12000, scoped, tag = 'internal scratch']
  #allocation2 [shape = 'f32[1,1]{1,0:T(1,128)S(1)}', space=vmem, size = 0x200, scoped, tag = 'scoped memory for cbf_forward.1']
  %s0 = inlined_call_operand.vmem [shape: bf16[64,8], index: 0, kind: input, shape index: {}]
  %s1 = inlined_call_operand.vmem [shape: bf16[8,64], index: 1, kind: input, shape index: {}]
  %s2 = inlined_call_operand.vmem [shape: f32[1,64], index: 2, kind: input, shape index: {}]
  %s3 = inlined_call_operand.vmem [shape: bf16[64,128], index: 3, kind: input, shape index: {}]
  %s4 = inlined_call_operand.vmem [shape: f32[1,128], index: 4, kind: input, shape index: {}]
  %s5 = inlined_call_operand.vmem [shape: bf16[128,128], index: 5, kind: input, shape index: {}]
  %s6 = inlined_call_operand.vmem [shape: f32[1,128], index: 6, kind: input, shape index: {}]
  %s7 = inlined_call_operand.vmem [shape: bf16[1,128], index: 7, kind: input, shape index: {}]
  %s8 = inlined_call_operand.<no memory space> [shape: f32[1,1], index: 8, kind: input, shape index: {}]
  %s9 = inlined_call_operand.vmem [shape: f32[1,8], index: 9, kind: output, shape index: {}]
  %s10 = sld [smem:[#allocation0]]
  $region46: #{cbf_forward.1} parent=0
    _
  %s12 = ssub.s32 1, %s10
  %s13 = scalar_select 0, %s12, %s10
  %v14 = vstv %s8
  %15 = vst [vmem:[#allocation2] sm:$0x1] %v14
  // Predicated region
  $region2: #{cbf_forward.1} parent=0 // pred_check
    _
  $region3: #{cbf_forward.1} parent=0 // pred_check_branch
    %17 = sbr.rel (0) target = $region5
  $region4: #{cbf_forward.1} parent=0 // pred_region
    _
  $region5: #{cbf_forward.1} parent=0 // pred_fallthru
    _
  // Predicated region
  $region6: #{cbf_forward.1} parent=0 // pred_check
    _
  $region7: #{cbf_forward.1} parent=0 // pred_check_branch
    %19 = sbr.rel (0) target = $region9
  $region8: #{cbf_forward.1} parent=0 // pred_region
    _
  $region9: #{cbf_forward.1} parent=0 // pred_fallthru
    _
  // Predicated region
  $region10: #{cbf_forward.1} parent=0 // pred_check
    _
  $region11: #{cbf_forward.1} parent=0 // pred_check_branch
    %21 = sbr.rel (0) target = $region13
  $region12: #{cbf_forward.1} parent=0 // pred_region
    _
  $region13: #{cbf_forward.1} parent=0 // pred_fallthru
    _
  // Predicated region
  $region14: #{cbf_forward.1} parent=0 // pred_check
    _
  $region15: #{cbf_forward.1} parent=0 // pred_check_branch
    %23 = sbr.rel (0) target = $region17
  $region16: #{cbf_forward.1} parent=0 // pred_region
    _
  $region17: #{cbf_forward.1} parent=0 // pred_fallthru
    _
  // Predicated region
  $region18: #{cbf_forward.1} parent=0 // pred_check
    _
  $region19: #{cbf_forward.1} parent=0 // pred_check_branch
    %25 = sbr.rel (0) target = $region21
  $region20: #{cbf_forward.1} parent=0 // pred_region
    _
  $region21: #{cbf_forward.1} parent=0 // pred_fallthru
    _
  // Predicated region
  $region22: #{cbf_forward.1} parent=0 // pred_check
    _
  $region23: #{cbf_forward.1} parent=0 // pred_check_branch
    %27 = sbr.rel (0) target = $region25
  $region24: #{cbf_forward.1} parent=0 // pred_region
    _
  $region25: #{cbf_forward.1} parent=0 // pred_fallthru
    _
  // Predicated region
  $region26: #{cbf_forward.1} parent=0 // pred_check
    _
  $region27: #{cbf_forward.1} parent=0 // pred_check_branch
    %29 = sbr.rel (0) target = $region29
  $region28: #{cbf_forward.1} parent=0 // pred_region
    _
  $region29: #{cbf_forward.1} parent=0 // pred_fallthru
    _
  // Predicated region
  $region30: #{cbf_forward.1} parent=0 // pred_check
    _
  $region31: #{cbf_forward.1} parent=0 // pred_check_branch
    %31 = sbr.rel (0) target = $region33
  $region32: #{cbf_forward.1} parent=0 // pred_region
    _
  $region33: #{cbf_forward.1} parent=0 // pred_fallthru
    _
  // Predicated region
  $region34: #{cbf_forward.1} parent=0 // pred_check
    _
  $region35: #{cbf_forward.1} parent=0 // pred_check_branch
    %33 = sbr.rel (0) target = $region37
  $region36: #{cbf_forward.1} parent=0 // pred_region
    _
  $region37: #{cbf_forward.1} parent=0 // pred_fallthru
    _
  %v35 = vld [vmem:[%s0] sm:$0xf]
  %v36 = vld [vmem:[%s0 + $0x4] sm:$0xf]
  %v37 = vld [vmem:[%s0 + $0x8] sm:$0xf]
  %v38 = vld [vmem:[%s0 + $0xc] sm:$0xf]
  %v39 = vld [vmem:[%s0 + $0x10] sm:$0xf]
  %v40 = vld [vmem:[%s0 + $0x14] sm:$0xf]
  %v41 = vld [vmem:[%s0 + $0x18] sm:$0xf]
  %v42 = vld [vmem:[%s0 + $0x1c] sm:$0xf]
  %v43 = vld [vmem:[%s1] sm:$0xf]
  %v44 = vld [vmem:[%s2] sm:$0x1]
  %v46 = vlaneseq
  %v47 = vshrl.u32 %v46, 7
  %v48 = vsub.s32 0, %v47
  %v49 = vrot.slane %v44, %v48
  %v59 = vunpack.c.l.b16 %v35
  %v60 = vunpack.c.l.b16 %v36
  %v61 = vunpack.c.l.b16 %v37
  %v62 = vunpack.c.l.b16 %v38
  %v63 = vunpack.c.l.b16 %v39
  %v64 = vunpack.c.l.b16 %v40
  %v65 = vunpack.c.l.b16 %v41
  %v66 = vunpack.c.l.b16 %v42
  %v67 = vpack.c.b16 %v60, %v59
  %v68 = vpack.c.b16 %v62, %v61
  %v69 = vpack.c.b16 %v64, %v63
  %v70 = vpack.c.b16 %v66, %v65
  %vm71 = vcmask 64512
  %v73 = vsel %vm71, %v67, 0
  %v76 = vsel %vm71, %v68, 0
  %v79 = vsel %vm71, %v69, 0
  %v82 = vsel %vm71, %v70, 0
  %vm84 = vcmask 1043456
  %v86 = vsel %vm84, %v43, 0
  %88 = vmatprep.subr.bf16.mxu0 0
  %89 = vmatpush1.bf16.msra.mxu0 %v86
  %90 = vmatprep.subr.bf16.mxu0 0
  %91 = vmatpush1.bf16.msra.mxu0 0
  %92 = vmatprep.subr.bf16.mxu0 0
  %93 = vmatpush1.bf16.msra.mxu0 0
  %94 = vmatprep.subr.bf16.mxu0 0
  %95 = vmatpush1.bf16.msra.mxu0 0
  %96 = vmatprep.subr.bf16.mxu0 0
  %97 = vmatpush1.bf16.msra.mxu0 0
  %98 = vmatprep.subr.bf16.mxu0 0
  %99 = vmatpush1.bf16.msra.mxu0 0
  %100 = vmatprep.subr.bf16.mxu0 0
  %101 = vmatpush1.bf16.msra.mxu0 0
  %102 = vmatprep.subr.bf16.mxu0 0
  %103 = vmatpush1.bf16.msra.mxu0 0
  %104 = vmatprep.subr.bf16.mxu0 0
  %105 = vmatpush1.bf16.msra.mxu0 0
  %106 = vmatprep.subr.bf16.mxu0 0
  %107 = vmatpush1.bf16.msra.mxu0 0
  %108 = vmatprep.subr.bf16.mxu0 0
  %109 = vmatpush1.bf16.msra.mxu0 0
  %110 = vmatprep.subr.bf16.mxu0 0
  %111 = vmatpush1.bf16.msra.mxu0 0
  %112 = vmatprep.subr.bf16.mxu0 0
  %113 = vmatpush1.bf16.msra.mxu0 0
  %114 = vmatprep.subr.bf16.mxu0 0
  %115 = vmatpush1.bf16.msra.mxu0 0
  %116 = vmatprep.subr.bf16.mxu0 0
  %117 = vmatpush1.bf16.msra.mxu0 0
  %118 = vmatprep.subr.bf16.mxu0 0
  %119 = vmatpush1.bf16.msra.mxu0 0
  %120 = vmatprep.mubr.bf16.mxu0 0
  %121 = vmatmul.mubr.bf16.gmra.mrb[0].mxu0 %v73
  %v122 = vpop.f32.mrb[0].mxu0
  %v123 = vadd.f32 %v49, %v122
  %v124 = vpop.f32.mrb[0].mxu0
  %v125 = vpop.f32.mrb[0].mxu0
  %v126 = vadd.f32 %v49, %v125
  %v127 = vpop.f32.mrb[0].mxu0
  %128 = vmatprep.mubr.bf16.mxu0 0
  %129 = vmatmul.mubr.bf16.gmra.mrb[0].mxu0 %v76
  %v130 = vpop.f32.mrb[0].mxu0
  %v131 = vadd.f32 %v49, %v130
  %v132 = vpop.f32.mrb[0].mxu0
  %v133 = vpop.f32.mrb[0].mxu0
  %v134 = vadd.f32 %v49, %v133
  %v135 = vpop.f32.mrb[0].mxu0
  %136 = vmatprep.mubr.bf16.mxu0 0
  %137 = vmatmul.mubr.bf16.gmra.mrb[0].mxu0 %v79
  %v138 = vpop.f32.mrb[0].mxu0
  %v139 = vadd.f32 %v49, %v138
  %v140 = vpop.f32.mrb[0].mxu0
  %v141 = vpop.f32.mrb[0].mxu0
  %v142 = vadd.f32 %v49, %v141
  %v143 = vpop.f32.mrb[0].mxu0
  %144 = vmatprep.mubr.bf16.mxu0 0
  %145 = vmatmul.mubr.bf16.gmra.mrb[0].mxu0 %v82
  %v146 = vpop.f32.mrb[0].mxu0
  %v147 = vadd.f32 %v49, %v146
  %v148 = vpop.f32.mrb[0].mxu0
  %v149 = vpop.f32.mrb[0].mxu0
  %v150 = vadd.f32 %v49, %v149
  %v151 = vpop.f32.mrb[0].mxu0
  %152 = vdwg.mxu0
  %v153 = vmax.f32 %v123, 0.0
  %v154 = vmax.f32 %v126, 0.0
  %v155 = vmax.f32 %v131, 0.0
  %v156 = vmax.f32 %v134, 0.0
  %v157 = vmax.f32 %v139, 0.0
  %v158 = vmax.f32 %v142, 0.0
  %v159 = vmax.f32 %v147, 0.0
  %v160 = vmax.f32 %v150, 0.0
  %v161 = vpack.c.bf16 %v154, %v153
  %v162 = vpack.c.bf16 %v156, %v155
  %v163 = vpack.c.bf16 %v158, %v157
  %v164 = vpack.c.bf16 %v160, %v159
  %v165 = vld [vmem:[%s3] sm:$0xf]
  %v166 = vld [vmem:[%s3 + $0x4] sm:$0xf]
  %v167 = vld [vmem:[%s3 + $0x8] sm:$0xf]
  %v168 = vld [vmem:[%s3 + $0xc] sm:$0xf]
  %v169 = vld [vmem:[%s3 + $0x10] sm:$0xf]
  %v170 = vld [vmem:[%s3 + $0x14] sm:$0xf]
  %v171 = vld [vmem:[%s3 + $0x18] sm:$0xf]
  %v172 = vld [vmem:[%s3 + $0x1c] sm:$0xf]
  %v173 = vld [vmem:[%s4] sm:$0x1]
  %v175 = vlaneseq
  %v176 = vshrl.u32 %v175, 7
  %v177 = vsub.s32 0, %v176
  %v178 = vrot.slane %v173, %v177
  %v188 = vunpack.c.l.b16 %v165
  %v189 = vunpack.c.l.b16 %v166
  %v190 = vunpack.c.l.b16 %v167
  %v191 = vunpack.c.l.b16 %v168
  %v192 = vunpack.c.l.b16 %v169
  %v193 = vunpack.c.l.b16 %v170
  %v194 = vunpack.c.l.b16 %v171
  %v195 = vunpack.c.l.b16 %v172
  %v196 = vpack.c.b16 %v189, %v188
  %v197 = vpack.c.b16 %v191, %v190
  %v198 = vpack.c.b16 %v193, %v192
  %v199 = vpack.c.b16 %v195, %v194
  %vm204 = vcmask 523264
  %v206 = vsel %vm204, %v161, 0
  %v209 = vsel %vm204, %v162, 0
  %v212 = vsel %vm204, %v163, 0
  %v215 = vsel %vm204, %v164, 0
  %217 = vmatprep.subr.bf16.mxu0 0
  %218 = vmatpush1.bf16.msra.mxu0 %v196
  %219 = vmatprep.subr.bf16.mxu0 0
  %220 = vmatpush1.bf16.msra.mxu0 %v197
  %221 = vmatprep.subr.bf16.mxu0 0
  %222 = vmatpush1.bf16.msra.mxu0 %v198
  %223 = vmatprep.subr.bf16.mxu0 0
  %224 = vmatpush1.bf16.msra.mxu0 %v199
  %225 = vmatprep.subr.bf16.mxu0 0
  %226 = vmatpush1.bf16.msra.mxu0 0
  %227 = vmatprep.subr.bf16.mxu0 0
  %228 = vmatpush1.bf16.msra.mxu0 0
  %229 = vmatprep.subr.bf16.mxu0 0
  %230 = vmatpush1.bf16.msra.mxu0 0
  %231 = vmatprep.subr.bf16.mxu0 0
  %232 = vmatpush1.bf16.msra.mxu0 0
  %233 = vmatprep.subr.bf16.mxu0 0
  %234 = vmatpush1.bf16.msra.mxu0 0
  %235 = vmatprep.subr.bf16.mxu0 0
  %236 = vmatpush1.bf16.msra.mxu0 0
  %237 = vmatprep.subr.bf16.mxu0 0
  %238 = vmatpush1.bf16.msra.mxu0 0
  %239 = vmatprep.subr.bf16.mxu0 0
  %240 = vmatpush1.bf16.msra.mxu0 0
  %241 = vmatprep.subr.bf16.mxu0 0
  %242 = vmatpush1.bf16.msra.mxu0 0
  %243 = vmatprep.subr.bf16.mxu0 0
  %244 = vmatpush1.bf16.msra.mxu0 0
  %245 = vmatprep.subr.bf16.mxu0 0
  %246 = vmatpush1.bf16.msra.mxu0 0
  %247 = vmatprep.subr.bf16.mxu0 0
  %248 = vmatpush1.bf16.msra.mxu0 0
  %249 = vmatprep.mubr.bf16.mxu0 0
  %250 = vmatmul.mubr.bf16.gmra.mrb[0].mxu0 %v206
  %v251 = vpop.f32.mrb[0].mxu0
  %v252 = vadd.f32 %v178, %v251
  %v253 = vpop.f32.mrb[0].mxu0
  %v254 = vpop.f32.mrb[0].mxu0
  %v255 = vadd.f32 %v178, %v254
  %v256 = vpop.f32.mrb[0].mxu0
  %257 = vmatprep.mubr.bf16.mxu0 0
  %258 = vmatmul.mubr.bf16.gmra.mrb[0].mxu0 %v209
  %v259 = vpop.f32.mrb[0].mxu0
  %v260 = vadd.f32 %v178, %v259
  %v261 = vpop.f32.mrb[0].mxu0
  %v262 = vpop.f32.mrb[0].mxu0
  %v263 = vadd.f32 %v178, %v262
  %v264 = vpop.f32.mrb[0].mxu0
  %265 = vmatprep.mubr.bf16.mxu0 0
  %266 = vmatmul.mubr.bf16.gmra.mrb[0].mxu0 %v212
  %v267 = vpop.f32.mrb[0].mxu0
  %v268 = vadd.f32 %v178, %v267
  %v269 = vpop.f32.mrb[0].mxu0
  %v270 = vpop.f32.mrb[0].mxu0
  %v271 = vadd.f32 %v178, %v270
  %v272 = vpop.f32.mrb[0].mxu0
  %273 = vmatprep.mubr.bf16.mxu0 0
  %274 = vmatmul.mubr.bf16.gmra.mrb[0].mxu0 %v215
  %v275 = vpop.f32.mrb[0].mxu0
  %v276 = vadd.f32 %v178, %v275
  %v277 = vpop.f32.mrb[0].mxu0
  %v278 = vpop.f32.mrb[0].mxu0
  %v279 = vadd.f32 %v178, %v278
  %v280 = vpop.f32.mrb[0].mxu0
  %281 = vdwg.mxu0
  %v282 = vmax.f32 %v252, 0.0
  %v283 = vmax.f32 %v255, 0.0
  %v284 = vmax.f32 %v260, 0.0
  %v285 = vmax.f32 %v263, 0.0
  %v286 = vmax.f32 %v268, 0.0
  %v287 = vmax.f32 %v271, 0.0
  %v288 = vmax.f32 %v276, 0.0
  %v289 = vmax.f32 %v279, 0.0
  %v290 = vpack.c.bf16 %v283, %v282
  %v291 = vpack.c.bf16 %v285, %v284
  %v292 = vpack.c.bf16 %v287, %v286
  %v293 = vpack.c.bf16 %v289, %v288
  %v294 = vld [vmem:[%s5] sm:$0xf]
  %v295 = vld [vmem:[%s5 + $0x4] sm:$0xf]
  %v296 = vld [vmem:[%s5 + $0x8] sm:$0xf]
  %v297 = vld [vmem:[%s5 + $0xc] sm:$0xf]
  %v298 = vld [vmem:[%s5 + $0x10] sm:$0xf]
  %v299 = vld [vmem:[%s5 + $0x14] sm:$0xf]
  %v300 = vld [vmem:[%s5 + $0x18] sm:$0xf]
  %v301 = vld [vmem:[%s5 + $0x1c] sm:$0xf]
  %v302 = vld [vmem:[%s5 + $0x20] sm:$0xf]
  %v303 = vld [vmem:[%s5 + $0x24] sm:$0xf]
  %v304 = vld [vmem:[%s5 + $0x28] sm:$0xf]
  %v305 = vld [vmem:[%s5 + $0x2c] sm:$0xf]
  %v306 = vld [vmem:[%s5 + $0x30] sm:$0xf]
  %v307 = vld [vmem:[%s5 + $0x34] sm:$0xf]
  %v308 = vld [vmem:[%s5 + $0x38] sm:$0xf]
  %v309 = vld [vmem:[%s5 + $0x3c] sm:$0xf]
  %v310 = vld [vmem:[%s6] sm:$0x1]
  %v312 = vlaneseq
  %v313 = vshrl.u32 %v312, 7
  %v314 = vsub.s32 0, %v313
  %v315 = vrot.slane %v310, %v314
  %v333 = vunpack.c.l.b16 %v294
  %v334 = vunpack.c.l.b16 %v295
  %v335 = vunpack.c.l.b16 %v296
  %v336 = vunpack.c.l.b16 %v297
  %v337 = vunpack.c.l.b16 %v298
  %v338 = vunpack.c.l.b16 %v299
  %v339 = vunpack.c.l.b16 %v300
  %v340 = vunpack.c.l.b16 %v301
  %v341 = vunpack.c.l.b16 %v302
  %v342 = vunpack.c.l.b16 %v303
  %v343 = vunpack.c.l.b16 %v304
  %v344 = vunpack.c.l.b16 %v305
  %v345 = vunpack.c.l.b16 %v306
  %v346 = vunpack.c.l.b16 %v307
  %v347 = vunpack.c.l.b16 %v308
  %v348 = vunpack.c.l.b16 %v309
  %v349 = vpack.c.b16 %v334, %v333
  %v350 = vpack.c.b16 %v336, %v335
  %v351 = vpack.c.b16 %v338, %v337
  %v352 = vpack.c.b16 %v340, %v339
  %v353 = vpack.c.b16 %v342, %v341
  %v354 = vpack.c.b16 %v344, %v343
  %v355 = vpack.c.b16 %v346, %v345
  %v356 = vpack.c.b16 %v348, %v347
  %365 = vmatprep.subr.bf16.mxu0 0
  %366 = vmatpush1.bf16.msra.mxu0 %v349
  %367 = vmatprep.subr.bf16.mxu0 0
  %368 = vmatpush1.bf16.msra.mxu0 %v350
  %369 = vmatprep.subr.bf16.mxu0 0
  %370 = vmatpush1.bf16.msra.mxu0 %v351
  %371 = vmatprep.subr.bf16.mxu0 0
  %372 = vmatpush1.bf16.msra.mxu0 %v352
  %373 = vmatprep.subr.bf16.mxu0 0
  %374 = vmatpush1.bf16.msra.mxu0 %v353
  %375 = vmatprep.subr.bf16.mxu0 0
  %376 = vmatpush1.bf16.msra.mxu0 %v354
  %377 = vmatprep.subr.bf16.mxu0 0
  %378 = vmatpush1.bf16.msra.mxu0 %v355
  %379 = vmatprep.subr.bf16.mxu0 0
  %380 = vmatpush1.bf16.msra.mxu0 %v356
  %381 = vmatprep.subr.bf16.mxu0 0
  %382 = vmatpush1.bf16.msra.mxu0 0
  %383 = vmatprep.subr.bf16.mxu0 0
  %384 = vmatpush1.bf16.msra.mxu0 0
  %385 = vmatprep.subr.bf16.mxu0 0
  %386 = vmatpush1.bf16.msra.mxu0 0
  %387 = vmatprep.subr.bf16.mxu0 0
  %388 = vmatpush1.bf16.msra.mxu0 0
  %389 = vmatprep.subr.bf16.mxu0 0
  %390 = vmatpush1.bf16.msra.mxu0 0
  %391 = vmatprep.subr.bf16.mxu0 0
  %392 = vmatpush1.bf16.msra.mxu0 0
  %393 = vmatprep.subr.bf16.mxu0 0
  %394 = vmatpush1.bf16.msra.mxu0 0
  %395 = vmatprep.subr.bf16.mxu0 0
  %396 = vmatpush1.bf16.msra.mxu0 0
  %397 = vmatprep.mubr.bf16.mxu0 0
  %398 = vmatmul.mubr.bf16.gmra.mrb[0].mxu0 %v290
  %v399 = vpop.f32.mrb[0].mxu0
  %v400 = vadd.f32 %v315, %v399
  %v401 = vpop.f32.mrb[0].mxu0
  %v402 = vpop.f32.mrb[0].mxu0
  %v403 = vadd.f32 %v315, %v402
  %v404 = vpop.f32.mrb[0].mxu0
  %405 = vmatprep.mubr.bf16.mxu0 0
  %406 = vmatmul.mubr.bf16.gmra.mrb[0].mxu0 %v291
  %v407 = vpop.f32.mrb[0].mxu0
  %v408 = vadd.f32 %v315, %v407
  %v409 = vpop.f32.mrb[0].mxu0
  %v410 = vpop.f32.mrb[0].mxu0
  %v411 = vadd.f32 %v315, %v410
  %v412 = vpop.f32.mrb[0].mxu0
  %413 = vmatprep.mubr.bf16.mxu0 0
  %414 = vmatmul.mubr.bf16.gmra.mrb[0].mxu0 %v292
  %v415 = vpop.f32.mrb[0].mxu0
  %v416 = vadd.f32 %v315, %v415
  %v417 = vpop.f32.mrb[0].mxu0
  %v418 = vpop.f32.mrb[0].mxu0
  %v419 = vadd.f32 %v315, %v418
  %v420 = vpop.f32.mrb[0].mxu0
  %421 = vmatprep.mubr.bf16.mxu0 0
  %422 = vmatmul.mubr.bf16.gmra.mrb[0].mxu0 %v293
  %v423 = vpop.f32.mrb[0].mxu0
  %v424 = vadd.f32 %v315, %v423
  %v425 = vpop.f32.mrb[0].mxu0
  %v426 = vpop.f32.mrb[0].mxu0
  %v427 = vadd.f32 %v315, %v426
  %v428 = vpop.f32.mrb[0].mxu0
  %429 = vdwg.mxu0
  %v430 = vmax.f32 %v400, 0.0
  %v431 = vmax.f32 %v403, 0.0
  %v432 = vmax.f32 %v408, 0.0
  %v433 = vmax.f32 %v411, 0.0
  %v434 = vmax.f32 %v416, 0.0
  %v435 = vmax.f32 %v419, 0.0
  %v436 = vmax.f32 %v424, 0.0
  %v437 = vmax.f32 %v427, 0.0
  %v438 = vrot.slane %v430, 4
  %v439 = vmax.f32 %v430, %v438
  %v440 = vrot.slane %v439, 2
  %v441 = vmax.f32 %v439, %v440
  %v442 = vrot.slane %v441, 1
  %v443 = vmax.f32 %v441, %v442
  %v444 = vrot.slane %v431, 4
  %v445 = vmax.f32 %v431, %v444
  %v446 = vrot.slane %v445, 2
  %v447 = vmax.f32 %v445, %v446
  %v448 = vrot.slane %v447, 1
  %v449 = vmax.f32 %v447, %v448
  %v450 = vrot.slane %v432, 4
  %v451 = vmax.f32 %v432, %v450
  %v452 = vrot.slane %v451, 2
  %v453 = vmax.f32 %v451, %v452
  %v454 = vrot.slane %v453, 1
  %v455 = vmax.f32 %v453, %v454
  %v456 = vrot.slane %v433, 4
  %v457 = vmax.f32 %v433, %v456
  %v458 = vrot.slane %v457, 2
  %v459 = vmax.f32 %v457, %v458
  %v460 = vrot.slane %v459, 1
  %v461 = vmax.f32 %v459, %v460
  %v462 = vrot.slane %v434, 4
  %v463 = vmax.f32 %v434, %v462
  %v464 = vrot.slane %v463, 2
  %v465 = vmax.f32 %v463, %v464
  %v466 = vrot.slane %v465, 1
  %v467 = vmax.f32 %v465, %v466
  %v468 = vrot.slane %v435, 4
  %v469 = vmax.f32 %v435, %v468
  %v470 = vrot.slane %v469, 2
  %v471 = vmax.f32 %v469, %v470
  %v472 = vrot.slane %v471, 1
  %v473 = vmax.f32 %v471, %v472
  %v474 = vrot.slane %v436, 4
  %v475 = vmax.f32 %v436, %v474
  %v476 = vrot.slane %v475, 2
  %v477 = vmax.f32 %v475, %v476
  %v478 = vrot.slane %v477, 1
  %v479 = vmax.f32 %v477, %v478
  %v480 = vrot.slane %v437, 4
  %v481 = vmax.f32 %v437, %v480
  %v482 = vrot.slane %v481, 2
  %v483 = vmax.f32 %v481, %v482
  %v484 = vrot.slane %v483, 1
  %v485 = vmax.f32 %v483, %v484
  %v486 = vld [vmem:[%s7] sm:$0x1]
  %v487 = vpack.c.bf16 %v443, %v443
  %v488 = vpack.c.bf16 %v449, %v449
  %v489 = vpack.c.bf16 %v455, %v455
  %v490 = vpack.c.bf16 %v461, %v461
  %v491 = vpack.c.bf16 %v467, %v467
  %v492 = vpack.c.bf16 %v473, %v473
  %v493 = vpack.c.bf16 %v479, %v479
  %v494 = vpack.c.bf16 %v485, %v485
  %v495 = vld [vmem:[#allocation2] sm:$0x1]
  %497 = vset.pattern.permute.xlu0 0
  %498 = vperm.xlu0 %497, %v495
  %v499 = vpop.permute.xlu0 %498
  %v501 = vlaneseq
  %v502 = vshrl.u32 %v501, 7
  %v503 = vsub.s32 0, %v502
  %v504 = vrot.slane %v499, %v503
  %v513 = vunpack.c.l.b16 %v487
  %v514 = vunpack.c.l.b16 %v488
  %v515 = vunpack.c.l.b16 %v489
  %v516 = vunpack.c.l.b16 %v490
  %v517 = vunpack.c.l.b16 %v491
  %v518 = vunpack.c.l.b16 %v492
  %v519 = vunpack.c.l.b16 %v493
  %v520 = vunpack.c.l.b16 %v494
  %vm521 = vcmask 1041409
  %v522 = vsel %vm521, %v514, %v513
  %vm523 = vcmask 1042434
  %v524 = vsel %vm523, %v515, %v522
  %vm525 = vcmask 1043459
  %v526 = vsel %vm525, %v516, %v524
  %vm527 = vcmask 1044484
  %v528 = vsel %vm527, %v517, %v526
  %vm529 = vcmask 1045509
  %v530 = vsel %vm529, %v518, %v528
  %vm531 = vcmask 1046534
  %v532 = vsel %vm531, %v519, %v530
  %vm533 = vcmask 1047559
  %v534 = vsel %vm533, %v520, %v532
  %v535 = vpack.c.b16 %v534, %v534
  %537 = vmatprep.subr.bf16.mxu0 0
  %538 = vmatpush1.bf16.xpose.msra.mxu0 %v535
  %539 = vmatprep.subr.bf16.mxu0 0
  %540 = vmatpush1.bf16.xpose.msra.mxu0 0
  %541 = vmatprep.subr.bf16.mxu0 0
  %542 = vmatpush1.bf16.xpose.msra.mxu0 0
  %543 = vmatprep.subr.bf16.mxu0 0
  %544 = vmatpush1.bf16.xpose.msra.mxu0 0
  %545 = vmatprep.subr.bf16.mxu0 0
  %546 = vmatpush1.bf16.xpose.msra.mxu0 0
  %547 = vmatprep.subr.bf16.mxu0 0
  %548 = vmatpush1.bf16.xpose.msra.mxu0 0
  %549 = vmatprep.subr.bf16.mxu0 0
  %550 = vmatpush1.bf16.xpose.msra.mxu0 0
  %551 = vmatprep.subr.bf16.mxu0 0
  %552 = vmatpush1.bf16.xpose.msra.mxu0 0
  %553 = vmatprep.subr.bf16.mxu0 0
  %554 = vmatpush1.bf16.xpose.msra.mxu0 0
  %555 = vmatprep.subr.bf16.mxu0 0
  %556 = vmatpush1.bf16.xpose.msra.mxu0 0
  %557 = vmatprep.subr.bf16.mxu0 0
  %558 = vmatpush1.bf16.xpose.msra.mxu0 0
  %559 = vmatprep.subr.bf16.mxu0 0
  %560 = vmatpush1.bf16.xpose.msra.mxu0 0
  %561 = vmatprep.subr.bf16.mxu0 0
  %562 = vmatpush1.bf16.xpose.msra.mxu0 0
  %563 = vmatprep.subr.bf16.mxu0 0
  %564 = vmatpush1.bf16.xpose.msra.mxu0 0
  %565 = vmatprep.subr.bf16.mxu0 0
  %566 = vmatpush1.bf16.xpose.msra.mxu0 0
  %567 = vmatprep.subr.bf16.mxu0 0
  %568 = vmatpush1.bf16.xpose.msra.mxu0 0
  %569 = vmatprep.mubr.bf16.mxu0 0
  %570 = vmatmul.mubr.bf16.gmra.mrb[0].mxu0 %v486
  %v571 = vpop.f32.mrb[0].mxu0
  %v572 = vadd.f32 %v504, %v571
  %v573 = vpop.f32.mrb[0].mxu0
  %v574 = vpop.f32.mrb[0].mxu0
  %v575 = vpop.f32.mrb[0].mxu0
  %576 = vdwg.mxu0
  %vm577 = vcmask 57344
  %578 = vst.msk [vmem:[%s9] sm:$0x1] %vm577, %v572
  // Predicated region
  $region38: #{cbf_forward.1} parent=0 // pred_check
    _
  $region39: #{cbf_forward.1} parent=0 // pred_check_branch
    %580 = sbr.rel (0) target = $region41
  $region40: #{cbf_forward.1} parent=0 // pred_region
    _
  $region41: #{cbf_forward.1} parent=0 // pred_fallthru
    _
  // Predicated region
  $region42: #{cbf_forward.1} parent=0 // pred_check
    _
  $region43: #{cbf_forward.1} parent=0 // pred_check_branch
    %582 = sbr.rel (0) target = $region45
  $region44: #{cbf_forward.1} parent=0 // pred_region
    _
  $region45: #{cbf_forward.1} parent=0 // pred_fallthru
    _

</llo_original>
